<compile_context>
chip_gen: v6e
topology: v6e:2x2x1
jax: 0.10.0
libtpu: 0.0.40
codegen_flags: <defaults>
</compile_context>

<pallas_src>
import numpy as np
import jax
import jax.numpy as jnp
from jax import lax
from jax.experimental import pallas as pl
from jax.experimental.pallas import tpu as pltpu


_PAD_LOGIT = -1.0e9   # padded pixels: error ~ -1e9 -> sorts last, ELU(err)+1 == 0


def _round_up(x, m):
    return ((x + m - 1) // m) * m


def _vmem_budget_bytes():
    """Per-generation VMEM budget (v7x has 64 MiB physical; v5e/v6e 128 MiB)."""
    kind = ""
    try:
        kind = jax.devices()[0].device_kind.lower()
    except Exception:
        pass
    if "v5" in kind or "v6" in kind:
        return 96 * 1024 * 1024
    return 48 * 1024 * 1024          # v7x / unknown: conservative


def _make_lovasz_hinge_kernel(imgs, n_pad, tile, batch, num_steps):
    n_tiles = n_pad // tile

    def _off(idx, t):
        if isinstance(idx, int):
            return idx * t
        return pl.multiple_of(idx * t, 128)

    def kernel(log_ref, lab_ref, out_ref, acc_ref):
        # log_ref / lab_ref: (imgs, n_pad) f32   (dense slab, no sublane-1 padding)
        # out_ref:           (1, imgs)     f32   per-image losses of this step
        # acc_ref:           (8*imgs, n_pad) f32 rows 8k: n_i, 8k+1: c_i of image k
        iota_lane = lax.broadcasted_iota(jnp.int32, (1, tile), 1)    # i within a tile
        iota_sub = lax.broadcasted_iota(jnp.int32, (tile, 1), 0)     # j within a tile
        ones_f = jnp.ones((1, tile), jnp.float32)
        zeros_f = jnp.zeros((6, tile), jnp.float32)

        acc_ref[...] = jnp.zeros_like(acc_ref)
        out_ref[...] = jnp.zeros_like(out_ref)

        step0 = pl.program_id(0) * imgs          # first global image of this step

        def always_valid(img):
            # Only the tail of the last step can be batch padding (all static ints).
            return (num_steps - 1) * imgs + img < batch

        def tile_image(img, j0, i0, tri_bf):
            """Add the contribution of elements j in [j0, j0+T) to the rank / positive
            counts of elements i in [i0, i0+T) for image `img`."""
            log_c = log_ref[pl.ds(img, 1), pl.ds(j0, tile)]           # (1, T)
            lab_c = lab_ref[pl.ds(img, 1), pl.ds(j0, tile)]
            e_c = 1.0 - log_c * (2.0 * lab_c - 1.0)
            # Column view of the chunk errors via a cheap (8, T) -> (T, 8) transpose.
            e_col = jnp.transpose(jnp.broadcast_to(e_c, (8, tile)))[:, 0:1]   # (T, 1)

            log_i = log_ref[pl.ds(img, 1), pl.ds(i0, tile)]           # (1, T)
            lab_i = lab_ref[pl.ds(img, 1), pl.ds(i0, tile)]
            e_row = 1.0 - log_i * (2.0 * lab_i - 1.0)                 # bit-identical recompute

            # M[j, i] = 1 iff element j sorts at-or-before element i (stable descending).
            gt_bf = (e_col > e_row).astype(jnp.bfloat16)              # (T, T)
            m_bf = jnp.where(e_col == e_row, tri_bf, gt_bf)

            # MXU LHS: row 0 -> n_i, row 1 -> c_i, rows 2..7 pad.  0/1 bf16 operands with
            # f32 accumulation keep the counts exact (N < 2^24).
            # TODO(synk): int8 mask on v5e/v6e (fp8 on v7x) would halve the mask footprint.
            lhs = jnp.concatenate([ones_f, lab_c, zeros_f], axis=0).astype(jnp.bfloat16)
            acc_ref[8 * img:8 * (img + 1), pl.ds(i0, tile)] += jnp.dot(
                lhs, m_bf, preferred_element_type=jnp.float32)

        def j_body(jc):
            j0 = _off(jc, tile)
            j_col = iota_sub + j0

            def i_body(ic):
                i0 = _off(ic, tile)
                # Tie-break mask: data independent -> built once per (j, i) tile and
                # shared by every image of this step.
                tri_bf = (j_col <= (iota_lane + i0)).astype(jnp.bfloat16)
                for img in range(imgs):
                    def work(img=img, j0=j0, i0=i0, tri_bf=tri_bf):
                        tile_image(img, j0, i0, tri_bf)
                    if always_valid(img):
                        work()
                    else:
                        pl.when(step0 + img < batch)(work)

            if n_tiles == 1:
                i_body(0)
            else:
                pl.loop(0, n_tiles)(i_body)

        if n_tiles == 1:
            j_body(0)
        else:
            pl.loop(0, n_tiles)(j_body)

        # ---- finalize: O(N) per image ----
        # TODO(synk): tile this finalize over the lane axis too for very large N.
        for img in range(imgs):
            def finalize(img=img):
                acc = acc_ref[8 * img:8 * (img + 1), :]
                n_i = acc[0:1, :]                          # rank + 1 (1-based)
                c_i = acc[1:2, :]                          # positives at-or-before rank
                log_row = log_ref[img:img + 1, :]
                gt_row = lab_ref[img:img + 1, :]
                e_row = 1.0 - log_row * (2.0 * gt_row - 1.0)
                gts = jnp.sum(gt_row)

                # Jaccard at this rank and at the previous rank.  The denominators are
                # integer counts; a zero can only occur in the unselected n_i<=1 branch,
                # so the clamp never changes the result but keeps everything finite.
                jac_here = 1.0 - (gts - c_i) / (gts + n_i - c_i)
                den_prev = jnp.maximum(gts + (n_i - 1.0) - (c_i - gt_row), 1.0)
                jac_prev = 1.0 - (gts - (c_i - gt_row)) / den_prev
                grad = jnp.where(n_i <= 1.0, jac_here, jac_here - jac_prev)

                # activation(errors) = ELU(errors, alpha=1) + 1
                act = jnp.where(e_row > 0.0, e_row + 1.0, jnp.exp(e_row))
                out_ref[0:1, img:img + 1] = jnp.sum(act * grad, axis=1, keepdims=True)

            if always_valid(img):
                finalize()
            else:
                pl.when(step0 + img < batch)(finalize)

    return kernel


def lovasz_hinge(logits, labels, *, images_per_step=None, lane_chunk=None):
    """logits, labels: (B, ...).  Scalar mean per-image Lovasz hinge loss
    (per_image=True, ignore=None, activation=ELU(x)+1)."""
    B = logits.shape[0]
    N = int(np.prod(logits.shape[1:]))
    logits = logits.astype(jnp.float32).reshape(B, N)
    labels = labels.astype(jnp.float32).reshape(B, N)

    vmem_budget = _vmem_budget_bytes()
    n128 = _round_up(N, 128)

    # >= 2 grid steps whenever B >= 2 so v7x can shard the batch axis over both TCs.
    if images_per_step is not None:
        imgs = max(1, int(images_per_step))
    else:
        imgs = min(8, max(1, -(-B // 2)))
    # Keep per-step resident state (double-buffered inputs + count accumulator +
    # finalize temporaries) within ~half the budget.
    while imgs > 1 and (16 * _round_up(imgs, 8) + 32 * imgs + 48) * n128 > vmem_budget // 2:
        imgs -= 1
    num_steps = -(-B // imgs)
    b_pad = num_steps * imgs

    # Square (T, T) comparison tiles sized so ~12 B/element of mask temporaries fit.
    resident = (16 * _round_up(imgs, 8) + 32 * imgs + 48) * n128
    avail = max(vmem_budget * 6 // 10 - resident, 12 * 128 * 128)
    tile = 128
    while tile < 2048 and 12 * (2 * tile) * (2 * tile) <= avail:
        tile *= 2
    if lane_chunk is not None:
        tile = max(128, min(tile, (int(lane_chunk) // 128) * 128))
    if n128 <= tile:
        tile = n128            # one tile covers the whole (padded) image
    n_pad = _round_up(n128, tile)

    # Padded pixels get error ~ -1e9 (sorts strictly last, gt=0, activation exactly 0),
    # so the ranks/counts/loss of real pixels are unchanged.  Padded batch rows are
    # additionally skipped inside the kernel with pl.when.
    pads = ((0, b_pad - B), (0, n_pad - N))
    logits = jnp.pad(logits, pads, constant_values=_PAD_LOGIT)
    labels = jnp.pad(labels, pads)
    logits = logits.reshape(num_steps, imgs, n_pad)
    labels = labels.reshape(num_steps, imgs, n_pad)

    kernel = _make_lovasz_hinge_kernel(imgs, n_pad, tile, B, num_steps)

    losses = pl.pallas_call(
        kernel,
        out_shape=jax.ShapeDtypeStruct((num_steps, 1, imgs), jnp.float32),
        grid=(num_steps,),
        in_specs=[
            pl.BlockSpec((None, imgs, n_pad), lambda b: (b, 0, 0)),
            pl.BlockSpec((None, imgs, n_pad), lambda b: (b, 0, 0)),
        ],
        out_specs=pl.BlockSpec((None, 1, imgs), lambda b: (b, 0, 0)),
        scratch_shapes=[pltpu.VMEM((8 * imgs, n_pad), jnp.float32)],
        compiler_params=pltpu.CompilerParams(
            dimension_semantics=("parallel",),
            vmem_limit_bytes=int(vmem_budget),
        ),
    )(logits, labels)

    # per_image=True -> nanmean over images; with ignore=None no NaNs occur, so a plain
    # mean over the B valid per-image losses is exact.
    return jnp.mean(losses.reshape(b_pad)[:B])


def _reference_lovasz_hinge(logits, labels):
    """Pure-JAX reference mirroring the PyTorch module (sort-based)."""
    def per_image(log, lab):
        log = log.reshape(-1)
        lab = lab.reshape(-1).astype(jnp.float32)
        signs = 2.0 * lab - 1.0
        errors = 1.0 - log * signs
        order = jnp.argsort(-errors)
        es = errors[order]
        gs = lab[order]
        gts = gs.sum()
        inter = gts - jnp.cumsum(gs)
        union = gts + jnp.cumsum(1.0 - gs)
        jac = 1.0 - inter / union
        grad = jnp.concatenate([jac[:1], jac[1:] - jac[:-1]])
        act = jnp.where(es > 0.0, es, jnp.exp(es) - 1.0) + 1.0
        return jnp.dot(act, grad)

    return jnp.mean(jax.vmap(per_image)(logits, labels))


if __name__ == "__main__":
    key = jax.random.PRNGKey(0)
    k1, k2, k3, k4 = jax.random.split(key, 4)

    # Aligned case: B=2 -> 2 grid steps of 1 image each, single (256, 256) tile.
    B, H, W = 2, 16, 16
    logits = jax.random.normal(k1, (B, H, W), dtype=jnp.float32)
    labels = jax.random.bernoulli(k2, 0.5, (B, H, W)).astype(jnp.float32)
    loss = lovasz_hinge(logits, labels)
    jax.block_until_ready(loss)
    ref = _reference_lovasz_hinge(logits, labels)
    assert jnp.allclose(loss, ref, atol=1e-4, rtol=1e-4), (loss, ref)

    # Ragged case: exercises pixel padding (144 -> 256), batch padding with the pl.when
    # guard (B=3, imgs=2) and the tiled pl.loop path (2x2 tiles of 128x128).
    B2, H2, W2 = 3, 12, 12
    logits2 = jax.random.normal(k3, (B2, H2, W2), dtype=jnp.float32)
    labels2 = jax.random.bernoulli(k4, 0.3, (B2, H2, W2)).astype(jnp.float32)
    loss2 = lovasz_hinge(logits2, labels2, lane_chunk=128)
    jax.block_until_ready(loss2)
    ref2 = _reference_lovasz_hinge(logits2, labels2)
    assert jnp.allclose(loss2, ref2, atol=1e-4, rtol=1e-4), (loss2, ref2)

    print("KERNEL_OK")
</pallas_src>

<mosaic_0001>
module attributes {stable_mosaic.version = 11 : i64} {
  func.func @kernel(%arg0: i32, %arg1: memref<1x1x256xf32, #tpu.memory_space<vmem>>, %arg2: memref<1x1x256xf32, #tpu.memory_space<vmem>>, %arg3: memref<1x1x1xf32, #tpu.memory_space<vmem>>, %arg4: memref<8x256xf32, #tpu.memory_space<vmem>>) attributes {dimension_semantics = [#tpu.dimension_semantics<parallel>], iteration_bounds = array<i64: 2>, scalar_prefetch = 0 : i64, scratch_operands = 1 : i64, tpu.core_type = #tpu.core_type<tc>, window_params = [{transform_indices = @transform_0, window_bounds = array<i64: 1, 1, 256>}, {transform_indices = @transform_1, window_bounds = array<i64: 1, 1, 256>}, {transform_indices = @transform_2, window_bounds = array<i64: 1, 1, 1>}]} {
    %0 = tpu.iota {dimensions = array<i32: 1>} : vector<1x256xi32>
    %1 = tpu.iota {dimensions = array<i32: 0>} : vector<256x1xi32>
    %cst = arith.constant 1.000000e+00 : f32
    %2 = vector.broadcast %cst : f32 to vector<1x256xf32>
    %cst_0 = arith.constant 0.000000e+00 : f32
    %3 = vector.broadcast %cst_0 : f32 to vector<6x256xf32>
    %cst_1 = arith.constant 0.000000e+00 : f32
    %4 = vector.broadcast %cst_1 : f32 to vector<8x256xf32>
    %c0 = arith.constant 0 : index
    %c0_2 = arith.constant 0 : index
    %5 = vector.load %arg4[%c0, %c0_2] : memref<8x256xf32, #tpu.memory_space<vmem>>, vector<8x256xf32>
    tpu.vector_store %arg4[%c0, %c0_2], %4 {strides = array<i32>} : memref<8x256xf32, #tpu.memory_space<vmem>>, vector<8x256xf32>,
    %cst_3 = arith.constant 0.000000e+00 : f32
    %6 = vector.broadcast %cst_3 : f32 to vector<1x1xf32>
    %c0_4 = arith.constant 0 : index
    %c0_5 = arith.constant 0 : index
    %c0_6 = arith.constant 0 : index
    %7 = vector.load %arg3[%c0_4, %c0_5, %c0_6] : memref<1x1x1xf32, #tpu.memory_space<vmem>>, vector<1x1x1xf32>
    %8 = vector.shape_cast %7 : vector<1x1x1xf32> to vector<1x1xf32>
    %9 = vector.shape_cast %6 : vector<1x1xf32> to vector<1x1x1xf32>
    tpu.vector_store %arg3[%c0_4, %c0_5, %c0_6], %9 {strides = array<i32>} : memref<1x1x1xf32, #tpu.memory_space<vmem>>, vector<1x1x1xf32>,
    %c0_i32 = arith.constant 0 : i32
    %10 = vector.broadcast %c0_i32 : i32 to vector<256x1xi32>
    %11 = arith.addi %1, %10 : vector<256x1xi32>
    %c0_i32_7 = arith.constant 0 : i32
    %12 = vector.broadcast %c0_i32_7 : i32 to vector<1x256xi32>
    %13 = arith.addi %0, %12 : vector<1x256xi32>
    %14 = vector.broadcast %11 : vector<256x1xi32> to vector<256x256xi32>
    %15 = vector.broadcast %13 : vector<1x256xi32> to vector<256x256xi32>
    %16 = arith.cmpi sle, %14, %15 : vector<256x256xi32>
    %17 = arith.extui %16 : vector<256x256xi1> to vector<256x256xi32>
    %18 = arith.sitofp %17 : vector<256x256xi32> to vector<256x256xf32>
    %19 = arith.truncf %18 : vector<256x256xf32> to vector<256x256xbf16>
    %c0_8 = arith.constant 0 : index
    %c0_9 = arith.constant 0 : index
    %c0_10 = arith.constant 0 : index
    %20 = vector.load %arg1[%c0_8, %c0_9, %c0_10] : memref<1x1x256xf32, #tpu.memory_space<vmem>>, vector<1x1x256xf32>
    %21 = vector.shape_cast %20 : vector<1x1x256xf32> to vector<1x256xf32>
    %c0_11 = arith.constant 0 : index
    %c0_12 = arith.constant 0 : index
    %c0_13 = arith.constant 0 : index
    %22 = vector.load %arg2[%c0_11, %c0_12, %c0_13] : memref<1x1x256xf32, #tpu.memory_space<vmem>>, vector<1x1x256xf32>
    %23 = vector.shape_cast %22 : vector<1x1x256xf32> to vector<1x256xf32>
    %cst_14 = arith.constant 2.000000e+00 : f32
    %24 = vector.broadcast %cst_14 : f32 to vector<1x256xf32>
    %25 = arith.mulf %24, %23 : vector<1x256xf32>
    %cst_15 = arith.constant 1.000000e+00 : f32
    %26 = vector.broadcast %cst_15 : f32 to vector<1x256xf32>
    %27 = arith.subf %25, %26 : vector<1x256xf32>
    %28 = arith.mulf %21, %27 : vector<1x256xf32>
    %cst_16 = arith.constant 1.000000e+00 : f32
    %29 = vector.broadcast %cst_16 : f32 to vector<1x256xf32>
    %30 = arith.subf %29, %28 : vector<1x256xf32>
    %31 = vector.shape_cast %30 : vector<1x256xf32> to vector<1x256xf32>
    %32 = vector.broadcast %31 : vector<1x256xf32> to vector<8x256xf32>
    %33 = tpu.transpose %32, [1, 0] : vector<8x256xf32> -> vector<256x8xf32>
    %34 = vector.extract_strided_slice %33 {offsets = [0, 0], sizes = [256, 1], strides = [1, 1]} : vector<256x8xf32> to vector<256x1xf32>
    %c0_17 = arith.constant 0 : index
    %c0_18 = arith.constant 0 : index
    %c0_19 = arith.constant 0 : index
    %35 = vector.load %arg1[%c0_17, %c0_18, %c0_19] : memref<1x1x256xf32, #tpu.memory_space<vmem>>, vector<1x1x256xf32>
    %36 = vector.shape_cast %35 : vector<1x1x256xf32> to vector<1x256xf32>
    %c0_20 = arith.constant 0 : index
    %c0_21 = arith.constant 0 : index
    %c0_22 = arith.constant 0 : index
    %37 = vector.load %arg2[%c0_20, %c0_21, %c0_22] : memref<1x1x256xf32, #tpu.memory_space<vmem>>, vector<1x1x256xf32>
    %38 = vector.shape_cast %37 : vector<1x1x256xf32> to vector<1x256xf32>
    %cst_23 = arith.constant 2.000000e+00 : f32
    %39 = vector.broadcast %cst_23 : f32 to vector<1x256xf32>
    %40 = arith.mulf %39, %38 : vector<1x256xf32>
    %cst_24 = arith.constant 1.000000e+00 : f32
    %41 = vector.broadcast %cst_24 : f32 to vector<1x256xf32>
    %42 = arith.subf %40, %41 : vector<1x256xf32>
    %43 = arith.mulf %36, %42 : vector<1x256xf32>
    %cst_25 = arith.constant 1.000000e+00 : f32
    %44 = vector.broadcast %cst_25 : f32 to vector<1x256xf32>
    %45 = arith.subf %44, %43 : vector<1x256xf32>
    %46 = vector.broadcast %34 : vector<256x1xf32> to vector<256x256xf32>
    %47 = vector.broadcast %45 : vector<1x256xf32> to vector<256x256xf32>
    %48 = arith.cmpf ogt, %46, %47 : vector<256x256xf32>
    %49 = arith.extui %48 : vector<256x256xi1> to vector<256x256xi32>
    %50 = arith.sitofp %49 : vector<256x256xi32> to vector<256x256xf32>
    %51 = arith.truncf %50 : vector<256x256xf32> to vector<256x256xbf16>
    %52 = vector.broadcast %34 : vector<256x1xf32> to vector<256x256xf32>
    %53 = vector.broadcast %45 : vector<1x256xf32> to vector<256x256xf32>
    %54 = arith.cmpf oeq, %52, %53 : vector<256x256xf32>
    %55 = arith.select %54, %19, %51 : vector<256x256xi1>, vector<256x256xbf16>
    %56 = tpu.concatenate %2, %23, %3 in 0 : vector<1x256xf32>, vector<1x256xf32>, vector<6x256xf32> -> vector<8x256xf32>
    %57 = arith.truncf %56 : vector<8x256xf32> to vector<8x256xbf16>
    %c0_26 = arith.constant 0 : index
    %c0_27 = arith.constant 0 : index
    %58 = vector.load %arg4[%c0_26, %c0_27] : memref<8x256xf32, #tpu.memory_space<vmem>>, vector<8x256xf32>
    %cst_28 = arith.constant dense<0.000000e+00> : vector<8x256xf32>
    %59 = tpu.matmul %57, %55, %cst_28 {dimension_numbers = #tpu.dot_dimension_numbers<[1], [0], [0], [1], [0, 0, 1, 1], [], []>} : vector<8x256xbf16>, vector<256x256xbf16>, vector<8x256xf32> -> vector<8x256xf32>
    %60 = arith.addf %58, %59 : vector<8x256xf32>
    %c0_29 = arith.constant 0 : index
    %c0_30 = arith.constant 0 : index
    %61 = vector.load %arg4[%c0_29, %c0_30] : memref<8x256xf32, #tpu.memory_space<vmem>>, vector<8x256xf32>
    tpu.vector_store %arg4[%c0_29, %c0_30], %60 {strides = array<i32>} : memref<8x256xf32, #tpu.memory_space<vmem>>, vector<8x256xf32>,
    %c0_31 = arith.constant 0 : index
    %c0_32 = arith.constant 0 : index
    %62 = vector.load %arg4[%c0_31, %c0_32] : memref<8x256xf32, #tpu.memory_space<vmem>>, vector<8x256xf32>
    %63 = vector.extract_strided_slice %62 {offsets = [0, 0], sizes = [1, 256], strides = [1, 1]} : vector<8x256xf32> to vector<1x256xf32>
    %64 = vector.extract_strided_slice %62 {offsets = [1, 0], sizes = [1, 256], strides = [1, 1]} : vector<8x256xf32> to vector<1x256xf32>
    %c0_33 = arith.constant 0 : index
    %c0_34 = arith.constant 0 : index
    %c0_35 = arith.constant 0 : index
    %65 = vector.load %arg1[%c0_33, %c0_34, %c0_35] : memref<1x1x256xf32, #tpu.memory_space<vmem>>, vector<1x1x256xf32>
    %66 = vector.shape_cast %65 : vector<1x1x256xf32> to vector<1x256xf32>
    %c0_36 = arith.constant 0 : index
    %c0_37 = arith.constant 0 : index
    %c0_38 = arith.constant 0 : index
    %67 = vector.load %arg2[%c0_36, %c0_37, %c0_38] : memref<1x1x256xf32, #tpu.memory_space<vmem>>, vector<1x1x256xf32>
    %68 = vector.shape_cast %67 : vector<1x1x256xf32> to vector<1x256xf32>
    %cst_39 = arith.constant 2.000000e+00 : f32
    %69 = vector.broadcast %cst_39 : f32 to vector<1x256xf32>
    %70 = arith.mulf %69, %68 : vector<1x256xf32>
    %cst_40 = arith.constant 1.000000e+00 : f32
    %71 = vector.broadcast %cst_40 : f32 to vector<1x256xf32>
    %72 = arith.subf %70, %71 : vector<1x256xf32>
    %73 = arith.mulf %66, %72 : vector<1x256xf32>
    %cst_41 = arith.constant 1.000000e+00 : f32
    %74 = vector.broadcast %cst_41 : f32 to vector<1x256xf32>
    %75 = arith.subf %74, %73 : vector<1x256xf32>
    %76 = vector.shape_cast %68 : vector<1x256xf32> to vector<1x1x256xf32>
    %cst_42 = arith.constant dense<0.000000e+00> : vector<1xf32>
    %77 = vector.multi_reduction <add>, %76, %cst_42 [1, 2] : vector<1x1x256xf32> to vector<1xf32>
    %78 = vector.shape_cast %77 : vector<1xf32> to vector<1x1x1xf32>
    %79 = vector.extract %78[0, 0, 0] : f32 from vector<1x1x1xf32>
    %80 = vector.broadcast %79 : f32 to vector<1x256xf32>
    %81 = arith.subf %80, %64 : vector<1x256xf32>
    %82 = vector.broadcast %79 : f32 to vector<1x256xf32>
    %83 = arith.addf %82, %63 : vector<1x256xf32>
    %84 = arith.subf %83, %64 : vector<1x256xf32>
    %85 = arith.divf %81, %84 : vector<1x256xf32>
    %cst_43 = arith.constant 1.000000e+00 : f32
    %86 = vector.broadcast %cst_43 : f32 to vector<1x256xf32>
    %87 = arith.subf %86, %85 : vector<1x256xf32>
    %cst_44 = arith.constant 1.000000e+00 : f32
    %88 = vector.broadcast %cst_44 : f32 to vector<1x256xf32>
    %89 = arith.subf %63, %88 : vector<1x256xf32>
    %90 = vector.broadcast %79 : f32 to vector<1x256xf32>
    %91 = arith.addf %90, %89 : vector<1x256xf32>
    %92 = arith.subf %64, %68 : vector<1x256xf32>
    %93 = arith.subf %91, %92 : vector<1x256xf32>
    %cst_45 = arith.constant 1.000000e+00 : f32
    %94 = vector.broadcast %cst_45 : f32 to vector<1x256xf32>
    %95 = arith.maximumf %93, %94 : vector<1x256xf32>
    %96 = arith.subf %64, %68 : vector<1x256xf32>
    %97 = vector.broadcast %79 : f32 to vector<1x256xf32>
    %98 = arith.subf %97, %96 : vector<1x256xf32>
    %99 = arith.divf %98, %95 : vector<1x256xf32>
    %cst_46 = arith.constant 1.000000e+00 : f32
    %100 = vector.broadcast %cst_46 : f32 to vector<1x256xf32>
    %101 = arith.subf %100, %99 : vector<1x256xf32>
    %cst_47 = arith.constant 1.000000e+00 : f32
    %102 = vector.broadcast %cst_47 : f32 to vector<1x256xf32>
    %103 = arith.cmpf ole, %63, %102 : vector<1x256xf32>
    %104 = arith.subf %87, %101 : vector<1x256xf32>
    %105 = arith.select %103, %87, %104 : vector<1x256xi1>, vector<1x256xf32>
    %cst_48 = arith.constant 0.000000e+00 : f32
    %106 = vector.broadcast %cst_48 : f32 to vector<1x256xf32>
    %107 = arith.cmpf ogt, %75, %106 : vector<1x256xf32>
    %cst_49 = arith.constant 1.000000e+00 : f32
    %108 = vector.broadcast %cst_49 : f32 to vector<1x256xf32>
    %109 = arith.addf %75, %108 : vector<1x256xf32>
    %110 = math.exp %75 : vector<1x256xf32>
    %111 = arith.select %107, %109, %110 : vector<1x256xi1>, vector<1x256xf32>
    %112 = arith.mulf %111, %105 : vector<1x256xf32>
    %cst_50 = arith.constant dense<0.000000e+00> : vector<1xf32>
    %113 = vector.multi_reduction <add>, %112, %cst_50 [1] : vector<1x256xf32> to vector<1xf32>
    %114 = vector.shape_cast %113 : vector<1xf32> to vector<1x1xf32>
    %c0_51 = arith.constant 0 : index
    %c0_52 = arith.constant 0 : index
    %c0_53 = arith.constant 0 : index
    %115 = vector.load %arg3[%c0_51, %c0_52, %c0_53] : memref<1x1x1xf32, #tpu.memory_space<vmem>>, vector<1x1x1xf32>
    %116 = vector.shape_cast %115 : vector<1x1x1xf32> to vector<1x1xf32>
    %117 = vector.shape_cast %114 : vector<1x1xf32> to vector<1x1x1xf32>
    tpu.vector_store %arg3[%c0_51, %c0_52, %c0_53], %117 {strides = array<i32>} : memref<1x1x1xf32, #tpu.memory_space<vmem>>, vector<1x1x1xf32>,
    return
  }
  func.func @transform_0(%arg0: i32) -> (i32, i32, i32) {
    %c0_i32 = arith.constant 0 : i32
    %c0_i32_0 = arith.constant 0 : i32
    %c0_i32_1 = arith.constant 0 : i32
    return %arg0, %c0_i32, %c0_i32_0 : i32, i32, i32
  }
  func.func @transform_1(%arg0: i32) -> (i32, i32, i32) {
    %c0_i32 = arith.constant 0 : i32
    %c0_i32_0 = arith.constant 0 : i32
    %c0_i32_1 = arith.constant 0 : i32
    return %arg0, %c0_i32, %c0_i32_0 : i32, i32, i32
  }
  func.func @transform_2(%arg0: i32) -> (i32, i32, i32) {
    %c0_i32 = arith.constant 0 : i32
    %c0_i32_0 = arith.constant 0 : i32
    %c0_i32_1 = arith.constant 0 : i32
    return %arg0, %c0_i32, %c0_i32_0 : i32, i32, i32
  }
}

</mosaic_0001>

<llo_original>
// kernel: tpu_custom_call.1
$region0: #{tpu_custom_call.1}
  #allocation0 [shape = 'u32[]', space=smem, size = 0x4, offset = 0x4, fixed_abs, tag = 'smem constant byte address 0x4 - core index']
  #allocation1 [shape = 'u32[144,128]{1,0:T(1,128)}', space=vmem, size = 0x12000, scoped, tag = 'internal scratch']
  #allocation2 [shape = 'f32[8,256]{1,0:T(8,128)}', space=vmem, size = 0x2000, scoped, tag = 'scratch operand']
  %s0 = inlined_call_operand.hbm [shape: f32[2,1,256], index: 0, kind: input, shape index: {}]
  %s1 = inlined_call_operand.hbm [shape: f32[2,1,256], index: 1, kind: input, shape index: {}]
  %s2 = inlined_call_operand.vmem [shape: f32[2,1,1], index: 2, kind: output, shape index: {}]
  %s3 = sld [smem:[#allocation0]]
  $region49: #{tpu_custom_call.1} parent=0
    _
  %s5 = ssub.s32 1, %s3
  %s6 = scalar_select 0, %s5, %s3
  $region1: #{tpu_custom_call.1} parent=0
    #allocation3 [shape = 'u8[2048]{0}', space=vmem, size = 0x800, scoped, tag = 'input window, operand 0']
    #allocation4 [shape = 's32[2]{0}', space=sflag, size = 0x8, scoped, tag = 'scoped memory for tpu_custom_call.1']
    #allocation5 [shape = 'u8[2048]{0}', space=vmem, size = 0x800, scoped, tag = 'input window, operand 1']
    #allocation6 [shape = 's32[2]{0}', space=sflag, size = 0x8, scoped, tag = 'scoped memory for tpu_custom_call.1']
    %7 = vsyncpa [#allocation4], 0
    %s8 = scalar_lea.sflag [#allocation4], 1
    %9 = vsyncpa %s8, 0
    %10 = vsyncpa [#allocation6], 0
    %s11 = scalar_lea.sflag [#allocation6], 1
    %12 = vsyncpa %s11, 0
    loop: start=0, step=1, limit=4
    $region2: #{tpu_custom_call.1} parent=1 // loop_pre_header
      _
    $region3: #{tpu_custom_call.1} parent=1 // loop_header
      %s14 = sphi 0, %s18
      %p15 = scmp.ge.s32.totalorder %s14, 4
      %s24 = sphi 0, %s26
      %s27 = sphi 0, %s24
      %s28 = sphi 0, %s27
      %s44 = sphi 0, %s28
      %s50 = sphi 0, %s52
      %s53 = sphi 0, %s50
      %s54 = sphi 0, %s53
      %s70 = sphi 0, %s54
      %s76 = sphi 0, %s78
      %s79 = sphi 0, %s76
      %s80 = sphi 0, %s79
      %s96 = sphi 0, %s80
    $region4: #{tpu_custom_call.1} parent=1 // loop_header_branch
      %17 = sbr.rel (%p15) target = $region8
    $region5: #{tpu_custom_call.1} parent=1 // loop_body
      %s19 = ssub.s32 %s14, 1
      %s20 = ssub.s32 %s14, 2
      %s21 = sadd.s32 %s14, 1
      %s22 = ssub.s32 %s14, %s21
      %p23 = scmp.eq.s32.totalorder %s22, 0
      %s25 = sadd.s32 %s24, 1
      %s26 = scalar_select %p23, %s24, %s25
      %p29 = pneg %p23
      %p30 = scmp.eq.s32.totalorder %s14, 1
      %p31 = por %p29, %p30
      %p32 = scmp.ne.s32.totalorder %s24, %s27
      %p33 = scmp.eq.s32.totalorder %s14, 0
      %p34 = por %p32, %p33
      %p35 = scmp.ne.s32.totalorder %s24, %s27
      %p36 = scmp.eq.s32.totalorder %s19, 1
      %p37 = por %p35, %p36
      %p38 = scmp.ne.s32.totalorder %s27, %s28
      %p39 = scmp.eq.s32.totalorder %s19, 0
      %p40 = por %p38, %p39
      %p41 = scmp.ne.s32.totalorder %s27, %s28
      %p42 = scmp.eq.s32.totalorder %s20, 1
      %p43 = por %p41, %p42
      %p45 = scmp.ne.s32.totalorder %s28, %s44
      %p46 = scmp.eq.s32.totalorder %s20, 0
      %p47 = por %p45, %p46
      %s48 = ssub.s32 %s14, %s21
      %p49 = scmp.eq.s32.totalorder %s48, 0
      %s51 = sadd.s32 %s50, 1
      %s52 = scalar_select %p49, %s50, %s51
      %p55 = pneg %p49
      %p56 = scmp.eq.s32.totalorder %s14, 1
      %p57 = por %p55, %p56
      %p58 = scmp.ne.s32.totalorder %s50, %s53
      %p59 = scmp.eq.s32.totalorder %s14, 0
      %p60 = por %p58, %p59
      %p61 = scmp.ne.s32.totalorder %s50, %s53
      %p62 = scmp.eq.s32.totalorder %s19, 1
      %p63 = por %p61, %p62
      %p64 = scmp.ne.s32.totalorder %s53, %s54
      %p65 = scmp.eq.s32.totalorder %s19, 0
      %p66 = por %p64, %p65
      %p67 = scmp.ne.s32.totalorder %s53, %s54
      %p68 = scmp.eq.s32.totalorder %s20, 1
      %p69 = por %p67, %p68
      %p71 = scmp.ne.s32.totalorder %s54, %s70
      %p72 = scmp.eq.s32.totalorder %s20, 0
      %p73 = por %p71, %p72
      %s74 = ssub.s32 %s14, %s21
      %p75 = scmp.eq.s32.totalorder %s74, 0
      %s77 = sadd.s32 %s76, 1
      %s78 = scalar_select %p75, %s76, %s77
      %p81 = pneg %p75
      %p82 = scmp.eq.s32.totalorder %s14, 1
      %p83 = por %p81, %p82
      %p84 = scmp.ne.s32.totalorder %s76, %s79
      %p85 = scmp.eq.s32.totalorder %s14, 0
      %p86 = por %p84, %p85
      %p87 = scmp.ne.s32.totalorder %s76, %s79
      %p88 = scmp.eq.s32.totalorder %s19, 1
      %p89 = por %p87, %p88
      %p90 = scmp.ne.s32.totalorder %s79, %s80
      %p91 = scmp.eq.s32.totalorder %s19, 0
      %p92 = por %p90, %p91
      %p93 = scmp.ne.s32.totalorder %s79, %s80
      %p94 = scmp.eq.s32.totalorder %s20, 1
      %p95 = por %p93, %p94
      %p97 = scmp.ne.s32.totalorder %s80, %s96
      %p98 = scmp.eq.s32.totalorder %s20, 0
      %p99 = por %p97, %p98
      %p100 = scmp.le.s32.totalorder 1, %s14
      %p101 = scmp.lt.s32.totalorder %s14, 3
      %p102 = pnand %p100, %p101
      %p103 = pneg %p102
      // Predicated region
      $region9: #{tpu_custom_call.1} parent=5 // pred_check
        _
      $region10: #{tpu_custom_call.1} parent=5 // pred_check_branch
        %105 = sbr.rel (%p102) target = $region12
      $region11: #{tpu_custom_call.1} parent=5 // pred_region
        %s106 = ssub.s32 %s14, 1
      $region12: #{tpu_custom_call.1} parent=5 // pred_fallthru
        _
      %p107 = scmp.lt.s32.totalorder %s14, 2
      // Predicated region
      $region13: #{tpu_custom_call.1} parent=5 // pred_check
        %p108 = pneg %p107
      $region14: #{tpu_custom_call.1} parent=5 // pred_check_branch
        %110 = sbr.rel (%p108) target = $region16
      $region15: #{tpu_custom_call.1} parent=5 // pred_region
        // Predicated region
        $region17: #{tpu_custom_call.1} parent=15 // pred_check
          %p111 = pneg %p34
        $region18: #{tpu_custom_call.1} parent=15 // pred_check_branch
          %113 = sbr.rel (%p111) target = $region20
        $region19: #{tpu_custom_call.1} parent=15 // pred_region
          %s114 = sand.u32 %s24, 1
          %s115 = scalar_lea.sflag [#allocation4], %s114
          %s116 = sand.u32 %s24, 1
          %s117 = smul.addr %s116, 2
          %s118 = scalar_lea.vmem [#allocation3], %s117
          %s120 = ssub.s32 32, 32
          %121 = vsyncadd %s115, %s120
          %s122 = smul.addr %s14, 2
          %s123 = smul.addr %s122, 16
          %s124 = scalar_lea.hbm %s0, %s123
          %s126 = sshll.u32 %s118, 4
          %s127 = int_to_ptr.vmem [resolvable:$true] %s126
          %129 = dma.hbm_to_vmem [thread:$0]  %s124, 32, %s127, %s115
        $region20: #{tpu_custom_call.1} parent=15 // pred_fallthru
          _
        // Predicated region
        $region21: #{tpu_custom_call.1} parent=15 // pred_check
          %p130 = pneg %p60
        $region22: #{tpu_custom_call.1} parent=15 // pred_check_branch
          %132 = sbr.rel (%p130) target = $region24
        $region23: #{tpu_custom_call.1} parent=15 // pred_region
          %s133 = sand.u32 %s50, 1
          %s134 = scalar_lea.sflag [#allocation6], %s133
          %s135 = sand.u32 %s50, 1
          %s136 = smul.addr %s135, 2
          %s137 = scalar_lea.vmem [#allocation5], %s136
          %s139 = ssub.s32 32, 32
          %140 = vsyncadd %s134, %s139
          %s141 = smul.addr %s14, 2
          %s142 = smul.addr %s141, 16
          %s143 = scalar_lea.hbm %s1, %s142
          %s145 = sshll.u32 %s137, 4
          %s146 = int_to_ptr.vmem [resolvable:$true] %s145
          %148 = dma.hbm_to_vmem [thread:$0]  %s143, 32, %s146, %s134
        $region24: #{tpu_custom_call.1} parent=15 // pred_fallthru
          _
      $region16: #{tpu_custom_call.1} parent=5 // pred_fallthru
        _
      %p149 = scmp.le.s32.totalorder 1, %s14
      %p150 = scmp.lt.s32.totalorder %s14, 3
      %p151 = pnand %p149, %p150
      %p152 = pneg %p151
      // Predicated region
      $region25: #{tpu_custom_call.1} parent=5 // pred_check
        _
      $region26: #{tpu_custom_call.1} parent=5 // pred_check_branch
        %154 = sbr.rel (%p151) target = $region28
      $region27: #{tpu_custom_call.1} parent=5 // pred_region
        %s155 = ssub.s32 %s14, 1
        %s156 = sand.u32 %s27, 1
        %s157 = scalar_lea.sflag [#allocation4], %s156
        %s158 = sand.u32 %s27, 1
        %s159 = smul.addr %s158, 2
        %s160 = scalar_lea.vmem [#allocation3], %s159
        // Predicated region
        $region29: #{tpu_custom_call.1} parent=27 // pred_check
          %p161 = pneg %p40
        $region30: #{tpu_custom_call.1} parent=27 // pred_check_branch
          %163 = sbr.rel (%p161) target = $region32
        $region31: #{tpu_custom_call.1} parent=27 // pred_region
          %164 = dma.done %s157, 32
        $region32: #{tpu_custom_call.1} parent=27 // pred_fallthru
          _
        %s165 = sand.u32 %s53, 1
        %s166 = scalar_lea.sflag [#allocation6], %s165
        %s167 = sand.u32 %s53, 1
        %s168 = smul.addr %s167, 2
        %s169 = scalar_lea.vmem [#allocation5], %s168
        // Predicated region
        $region33: #{tpu_custom_call.1} parent=27 // pred_check
          %p170 = pneg %p66
        $region34: #{tpu_custom_call.1} parent=27 // pred_check_branch
          %172 = sbr.rel (%p170) target = $region36
        $region35: #{tpu_custom_call.1} parent=27 // pred_region
          %173 = dma.done %s166, 32
        $region36: #{tpu_custom_call.1} parent=27 // pred_fallthru
          _
        %s174 = sand.u32 %s27, 1
        %s175 = scalar_lea.sflag [#allocation4], %s174
        %s176 = sand.u32 %s27, 1
        %s177 = smul.addr %s176, 2
        %s178 = scalar_lea.vmem [#allocation3], %s177
        %p179 = pneg %p40
        %p180 = pneg %p37
        %s181 = sand.u32 %s53, 1
        %s182 = scalar_lea.sflag [#allocation6], %s181
        %s183 = sand.u32 %s53, 1
        %s184 = smul.addr %s183, 2
        %s185 = scalar_lea.vmem [#allocation5], %s184
        %p186 = pneg %p66
        %p187 = pneg %p63
        %p188 = pneg %p92
        %p189 = pneg %p89
        %p190 = scmp.lt.s32.totalorder %s19, 1
        %s191 = scalar_select %p190, %s19, 1
        %s192 = scalar_lea.vmem %s2, %s191
        %p193 = scmp.lt.s32.totalorder %s19, 1
        %s194 = scalar_select %p193, %s19, 1
        %s195 = scalar_lea.vmem %s2, %s194
        %v196 = vlaneseq
        %v197 = vand.u32 %v196, 127
        %v198 = vadd.s32 %v197, 128
        %v199 = vlaneseq
        %v200 = vshrl.u32 %v199, 7
        %v201 = vadd.s32 %v200, 8
        %v202 = vadd.s32 %v200, 16
        %v203 = vadd.s32 %v200, 24
        %v204 = vadd.s32 %v200, 32
        %v205 = vadd.s32 %v200, 40
        %v206 = vadd.s32 %v200, 48
        %v207 = vadd.s32 %v200, 56
        %v208 = vadd.s32 %v200, 64
        %v209 = vadd.s32 %v200, 72
        %v210 = vadd.s32 %v200, 80
        %v211 = vadd.s32 %v200, 88
        %v212 = vadd.s32 %v200, 96
        %v213 = vadd.s32 %v200, 104
        %v214 = vadd.s32 %v200, 112
        %v215 = vadd.s32 %v200, 120
        %v216 = vadd.s32 %v200, 128
        %v217 = vadd.s32 %v200, 136
        %v218 = vadd.s32 %v200, 144
        %v219 = vadd.s32 %v200, 152
        %v220 = vadd.s32 %v200, 160
        %v221 = vadd.s32 %v200, 168
        %v222 = vadd.s32 %v200, 176
        %v223 = vadd.s32 %v200, 184
        %v224 = vadd.s32 %v200, 192
        %v225 = vadd.s32 %v200, 200
        %v226 = vadd.s32 %v200, 208
        %v227 = vadd.s32 %v200, 216
        %v228 = vadd.s32 %v200, 224
        %v229 = vadd.s32 %v200, 232
        %v230 = vadd.s32 %v200, 240
        %v231 = vadd.s32 %v200, 248
        %232 = vst [vmem:[#allocation2] sm:$0xff] 0.0
        %233 = vst [vmem:[#allocation2 + $0x8] sm:$0xff] 0.0
        %vm234 = vcmask 0
        %235 = vst.msk [vmem:[%s195] sm:$0x1] %vm234, 0.0
        %vm236 = vcmp.le.s32.totalorder %v200, %v197
        %vm237 = vcmp.le.s32.totalorder %v200, %v198
        %vm238 = vcmp.le.s32.totalorder %v201, %v197
        %vm239 = vcmp.le.s32.totalorder %v201, %v198
        %vm240 = vcmp.le.s32.totalorder %v202, %v197
        %vm241 = vcmp.le.s32.totalorder %v202, %v198
        %vm242 = vcmp.le.s32.totalorder %v203, %v197
        %vm243 = vcmp.le.s32.totalorder %v203, %v198
        %vm244 = vcmp.le.s32.totalorder %v204, %v197
        %vm245 = vcmp.le.s32.totalorder %v204, %v198
        %vm246 = vcmp.le.s32.totalorder %v205, %v197
        %vm247 = vcmp.le.s32.totalorder %v205, %v198
        %vm248 = vcmp.le.s32.totalorder %v206, %v197
        %vm249 = vcmp.le.s32.totalorder %v206, %v198
        %vm250 = vcmp.le.s32.totalorder %v207, %v197
        %vm251 = vcmp.le.s32.totalorder %v207, %v198
        %vm252 = vcmp.le.s32.totalorder %v208, %v197
        %vm253 = vcmp.le.s32.totalorder %v208, %v198
        %vm254 = vcmp.le.s32.totalorder %v209, %v197
        %vm255 = vcmp.le.s32.totalorder %v209, %v198
        %vm256 = vcmp.le.s32.totalorder %v210, %v197
        %vm257 = vcmp.le.s32.totalorder %v210, %v198
        %vm258 = vcmp.le.s32.totalorder %v211, %v197
        %vm259 = vcmp.le.s32.totalorder %v211, %v198
        %vm260 = vcmp.le.s32.totalorder %v212, %v197
        %vm261 = vcmp.le.s32.totalorder %v212, %v198
        %vm262 = vcmp.le.s32.totalorder %v213, %v197
        %vm263 = vcmp.le.s32.totalorder %v213, %v198
        %vm264 = vcmp.le.s32.totalorder %v214, %v197
        %vm265 = vcmp.le.s32.totalorder %v214, %v198
        %vm266 = vcmp.le.s32.totalorder %v215, %v197
        %vm267 = vcmp.le.s32.totalorder %v215, %v198
        %vm268 = vcmp.le.s32.totalorder %v216, %v197
        %vm269 = vcmp.le.s32.totalorder %v216, %v198
        %vm270 = vcmp.le.s32.totalorder %v217, %v197
        %vm271 = vcmp.le.s32.totalorder %v217, %v198
        %vm272 = vcmp.le.s32.totalorder %v218, %v197
        %vm273 = vcmp.le.s32.totalorder %v218, %v198
        %vm274 = vcmp.le.s32.totalorder %v219, %v197
        %vm275 = vcmp.le.s32.totalorder %v219, %v198
        %vm276 = vcmp.le.s32.totalorder %v220, %v197
        %vm277 = vcmp.le.s32.totalorder %v220, %v198
        %vm278 = vcmp.le.s32.totalorder %v221, %v197
        %vm279 = vcmp.le.s32.totalorder %v221, %v198
        %vm280 = vcmp.le.s32.totalorder %v222, %v197
        %vm281 = vcmp.le.s32.totalorder %v222, %v198
        %vm282 = vcmp.le.s32.totalorder %v223, %v197
        %vm283 = vcmp.le.s32.totalorder %v223, %v198
        %vm284 = vcmp.le.s32.totalorder %v224, %v197
        %vm285 = vcmp.le.s32.totalorder %v224, %v198
        %vm286 = vcmp.le.s32.totalorder %v225, %v197
        %vm287 = vcmp.le.s32.totalorder %v225, %v198
        %vm288 = vcmp.le.s32.totalorder %v226, %v197
        %vm289 = vcmp.le.s32.totalorder %v226, %v198
        %vm290 = vcmp.le.s32.totalorder %v227, %v197
        %vm291 = vcmp.le.s32.totalorder %v227, %v198
        %vm292 = vcmp.le.s32.totalorder %v228, %v197
        %vm293 = vcmp.le.s32.totalorder %v228, %v198
        %vm294 = vcmp.le.s32.totalorder %v229, %v197
        %vm295 = vcmp.le.s32.totalorder %v229, %v198
        %vm296 = vcmp.le.s32.totalorder %v230, %v197
        %vm297 = vcmp.le.s32.totalorder %v230, %v198
        %vm298 = vcmp.le.s32.totalorder %v231, %v197
        %vm299 = vcmp.le.s32.totalorder %v231, %v198
        %v300 = vsel %vm236, 1, 0
        %v301 = vsel %vm237, 1, 0
        %v302 = vsel %vm238, 1, 0
        %v303 = vsel %vm239, 1, 0
        %v304 = vsel %vm240, 1, 0
        %v305 = vsel %vm241, 1, 0
        %v306 = vsel %vm242, 1, 0
        %v307 = vsel %vm243, 1, 0
        %v308 = vsel %vm244, 1, 0
        %v309 = vsel %vm245, 1, 0
        %v310 = vsel %vm246, 1, 0
        %v311 = vsel %vm247, 1, 0
        %v312 = vsel %vm248, 1, 0
        %v313 = vsel %vm249, 1, 0
        %v314 = vsel %vm250, 1, 0
        %v315 = vsel %vm251, 1, 0
        %v316 = vsel %vm252, 1, 0
        %v317 = vsel %vm253, 1, 0
        %v318 = vsel %vm254, 1, 0
        %v319 = vsel %vm255, 1, 0
        %v320 = vsel %vm256, 1, 0
        %v321 = vsel %vm257, 1, 0
        %v322 = vsel %vm258, 1, 0
        %v323 = vsel %vm259, 1, 0
        %v324 = vsel %vm260, 1, 0
        %v325 = vsel %vm261, 1, 0
        %v326 = vsel %vm262, 1, 0
        %v327 = vsel %vm263, 1, 0
        %v328 = vsel %vm264, 1, 0
        %v329 = vsel %vm265, 1, 0
        %v330 = vsel %vm266, 1, 0
        %v331 = vsel %vm267, 1, 0
        %v332 = vsel %vm268, 1, 0
        %v333 = vsel %vm269, 1, 0
        %v334 = vsel %vm270, 1, 0
        %v335 = vsel %vm271, 1, 0
        %v336 = vsel %vm272, 1, 0
        %v337 = vsel %vm273, 1, 0
        %v338 = vsel %vm274, 1, 0
        %v339 = vsel %vm275, 1, 0
        %v340 = vsel %vm276, 1, 0
        %v341 = vsel %vm277, 1, 0
        %v342 = vsel %vm278, 1, 0
        %v343 = vsel %vm279, 1, 0
        %v344 = vsel %vm280, 1, 0
        %v345 = vsel %vm281, 1, 0
        %v346 = vsel %vm282, 1, 0
        %v347 = vsel %vm283, 1, 0
        %v348 = vsel %vm284, 1, 0
        %v349 = vsel %vm285, 1, 0
        %v350 = vsel %vm286, 1, 0
        %v351 = vsel %vm287, 1, 0
        %v352 = vsel %vm288, 1, 0
        %v353 = vsel %vm289, 1, 0
        %v354 = vsel %vm290, 1, 0
        %v355 = vsel %vm291, 1, 0
        %v356 = vsel %vm292, 1, 0
        %v357 = vsel %vm293, 1, 0
        %v358 = vsel %vm294, 1, 0
        %v359 = vsel %vm295, 1, 0
        %v360 = vsel %vm296, 1, 0
        %v361 = vsel %vm297, 1, 0
        %v362 = vsel %vm298, 1, 0
        %v363 = vsel %vm299, 1, 0
        %v364 = vcvt.s32.f32 %v300
        %v365 = vcvt.s32.f32 %v301
        %v366 = vcvt.s32.f32 %v302
        %v367 = vcvt.s32.f32 %v303
        %v368 = vcvt.s32.f32 %v304
        %v369 = vcvt.s32.f32 %v305
        %v370 = vcvt.s32.f32 %v306
        %v371 = vcvt.s32.f32 %v307
        %v372 = vcvt.s32.f32 %v308
        %v373 = vcvt.s32.f32 %v309
        %v374 = vcvt.s32.f32 %v310
        %v375 = vcvt.s32.f32 %v311
        %v376 = vcvt.s32.f32 %v312
        %v377 = vcvt.s32.f32 %v313
        %v378 = vcvt.s32.f32 %v314
        %v379 = vcvt.s32.f32 %v315
        %v380 = vcvt.s32.f32 %v316
        %v381 = vcvt.s32.f32 %v317
        %v382 = vcvt.s32.f32 %v318
        %v383 = vcvt.s32.f32 %v319
        %v384 = vcvt.s32.f32 %v320
        %v385 = vcvt.s32.f32 %v321
        %v386 = vcvt.s32.f32 %v322
        %v387 = vcvt.s32.f32 %v323
        %v388 = vcvt.s32.f32 %v324
        %v389 = vcvt.s32.f32 %v325
        %v390 = vcvt.s32.f32 %v326
        %v391 = vcvt.s32.f32 %v327
        %v392 = vcvt.s32.f32 %v328
        %v393 = vcvt.s32.f32 %v329
        %v394 = vcvt.s32.f32 %v330
        %v395 = vcvt.s32.f32 %v331
        %v396 = vcvt.s32.f32 %v332
        %v397 = vcvt.s32.f32 %v333
        %v398 = vcvt.s32.f32 %v334
        %v399 = vcvt.s32.f32 %v335
        %v400 = vcvt.s32.f32 %v336
        %v401 = vcvt.s32.f32 %v337
        %v402 = vcvt.s32.f32 %v338
        %v403 = vcvt.s32.f32 %v339
        %v404 = vcvt.s32.f32 %v340
        %v405 = vcvt.s32.f32 %v341
        %v406 = vcvt.s32.f32 %v342
        %v407 = vcvt.s32.f32 %v343
        %v408 = vcvt.s32.f32 %v344
        %v409 = vcvt.s32.f32 %v345
        %v410 = vcvt.s32.f32 %v346
        %v411 = vcvt.s32.f32 %v347
        %v412 = vcvt.s32.f32 %v348
        %v413 = vcvt.s32.f32 %v349
        %v414 = vcvt.s32.f32 %v350
        %v415 = vcvt.s32.f32 %v351
        %v416 = vcvt.s32.f32 %v352
        %v417 = vcvt.s32.f32 %v353
        %v418 = vcvt.s32.f32 %v354
        %v419 = vcvt.s32.f32 %v355
        %v420 = vcvt.s32.f32 %v356
        %v421 = vcvt.s32.f32 %v357
        %v422 = vcvt.s32.f32 %v358
        %v423 = vcvt.s32.f32 %v359
        %v424 = vcvt.s32.f32 %v360
        %v425 = vcvt.s32.f32 %v361
        %v426 = vcvt.s32.f32 %v362
        %v427 = vcvt.s32.f32 %v363
        %v428 = vpack.c.bf16 %v366, %v364
        %v429 = vpack.c.bf16 %v367, %v365
        %v430 = vpack.c.bf16 %v370, %v368
        %v431 = vpack.c.bf16 %v371, %v369
        %v432 = vpack.c.bf16 %v374, %v372
        %v433 = vpack.c.bf16 %v375, %v373
        %v434 = vpack.c.bf16 %v378, %v376
        %v435 = vpack.c.bf16 %v379, %v377
        %v436 = vpack.c.bf16 %v382, %v380
        %v437 = vpack.c.bf16 %v383, %v381
        %v438 = vpack.c.bf16 %v386, %v384
        %v439 = vpack.c.bf16 %v387, %v385
        %v440 = vpack.c.bf16 %v390, %v388
        %v441 = vpack.c.bf16 %v391, %v389
        %v442 = vpack.c.bf16 %v394, %v392
        %v443 = vpack.c.bf16 %v395, %v393
        %v444 = vpack.c.bf16 %v398, %v396
        %v445 = vpack.c.bf16 %v399, %v397
        %v446 = vpack.c.bf16 %v402, %v400
        %v447 = vpack.c.bf16 %v403, %v401
        %v448 = vpack.c.bf16 %v406, %v404
        %v449 = vpack.c.bf16 %v407, %v405
        %v450 = vpack.c.bf16 %v410, %v408
        %v451 = vpack.c.bf16 %v411, %v409
        %v452 = vpack.c.bf16 %v414, %v412
        %v453 = vpack.c.bf16 %v415, %v413
        %v454 = vpack.c.bf16 %v418, %v416
        %v455 = vpack.c.bf16 %v419, %v417
        %v456 = vpack.c.bf16 %v422, %v420
        %v457 = vpack.c.bf16 %v423, %v421
        %v458 = vpack.c.bf16 %v426, %v424
        %v459 = vpack.c.bf16 %v427, %v425
        %v460 = vld [vmem:[%s160] sm:$0x3]
        %v461 = vld [vmem:[%s169] sm:$0x3]
        %v462 = vmul.f32 %v461, 2.0
        %v463 = vsub.f32 %v462, 1.0
        %v464 = vmul.f32 %v460, %v463
        %v465 = vsub.f32 1.0, %v464
        %v467 = vlaneseq
        %v468 = vshrl.u32 %v467, 7
        %v469 = vsub.s32 0, %v468
        %v470 = vrot.slane %v465, %v469
        %v471 = vlaneseq
        %v472 = vshrl.u32 %v471, 7
        %v473 = vsub.s32 1, %v472
        %v474 = vrot.slane %v465, %v473
        %477 = vxpose.xlu0.b32.start [1/16] %v470, 128
        %478 = vxpose.xlu0.b32.cont [2/16] 0.0, 128
        %479 = vxpose.xlu0.b32.cont [3/16] 0.0, 128
        %480 = vxpose.xlu0.b32.cont [4/16] 0.0, 128
        %481 = vxpose.xlu0.b32.cont [5/16] 0.0, 128
        %482 = vxpose.xlu0.b32.cont [6/16] 0.0, 128
        %483 = vxpose.xlu0.b32.cont [7/16] 0.0, 128
        %484 = vxpose.xlu0.b32.cont [8/16] 0.0, 128
        %485 = vxpose.xlu0.b32.cont [9/16] 0.0, 128
        %486 = vxpose.xlu0.b32.cont [10/16] 0.0, 128
        %487 = vxpose.xlu0.b32.cont [11/16] 0.0, 128
        %488 = vxpose.xlu0.b32.cont [12/16] 0.0, 128
        %489 = vxpose.xlu0.b32.cont [13/16] 0.0, 128
        %490 = vxpose.xlu0.b32.cont [14/16] 0.0, 128
        %491 = vxpose.xlu0.b32.cont [15/16] 0.0, 128
        %492 = vxpose.xlu0.b32.end [16/16] 0.0, 128
        %v493 = vpop.trf.xlu0
        %v494 = vpop.trf.xlu0
        %v495 = vpop.trf.xlu0
        %v496 = vpop.trf.xlu0
        %v497 = vpop.trf.xlu0
        %v498 = vpop.trf.xlu0
        %v499 = vpop.trf.xlu0
        %v500 = vpop.trf.xlu0
        %v501 = vpop.trf.xlu0
        %v502 = vpop.trf.xlu0
        %v503 = vpop.trf.xlu0
        %v504 = vpop.trf.xlu0
        %v505 = vpop.trf.xlu0
        %v506 = vpop.trf.xlu0
        %v507 = vpop.trf.xlu0
        %v508 = vpop.trf.xlu0
        %509 = vxpose.xlu0.b32.start [1/16] %v474, 128
        %510 = vxpose.xlu0.b32.cont [2/16] 0.0, 128
        %511 = vxpose.xlu0.b32.cont [3/16] 0.0, 128
        %512 = vxpose.xlu0.b32.cont [4/16] 0.0, 128
        %513 = vxpose.xlu0.b32.cont [5/16] 0.0, 128
        %514 = vxpose.xlu0.b32.cont [6/16] 0.0, 128
        %515 = vxpose.xlu0.b32.cont [7/16] 0.0, 128
        %516 = vxpose.xlu0.b32.cont [8/16] 0.0, 128
        %517 = vxpose.xlu0.b32.cont [9/16] 0.0, 128
        %518 = vxpose.xlu0.b32.cont [10/16] 0.0, 128
        %519 = vxpose.xlu0.b32.cont [11/16] 0.0, 128
        %520 = vxpose.xlu0.b32.cont [12/16] 0.0, 128
        %521 = vxpose.xlu0.b32.cont [13/16] 0.0, 128
        %522 = vxpose.xlu0.b32.cont [14/16] 0.0, 128
        %523 = vxpose.xlu0.b32.cont [15/16] 0.0, 128
        %524 = vxpose.xlu0.b32.end [16/16] 0.0, 128
        %v525 = vpop.trf.xlu0
        %v526 = vpop.trf.xlu0
        %v527 = vpop.trf.xlu0
        %v528 = vpop.trf.xlu0
        %v529 = vpop.trf.xlu0
        %v530 = vpop.trf.xlu0
        %v531 = vpop.trf.xlu0
        %v532 = vpop.trf.xlu0
        %v533 = vpop.trf.xlu0
        %v534 = vpop.trf.xlu0
        %v535 = vpop.trf.xlu0
        %v536 = vpop.trf.xlu0
        %v537 = vpop.trf.xlu0
        %v538 = vpop.trf.xlu0
        %v539 = vpop.trf.xlu0
        %v540 = vpop.trf.xlu0
        %542 = vset.pattern.permute.xlu0 0
        %543 = vperm.xlu0 %542, %v493
        %v544 = vpop.permute.xlu0 %543
        %547 = vset.pattern.permute.xlu0 0
        %548 = vperm.xlu0 %547, %v494
        %v549 = vpop.permute.xlu0 %548
        %552 = vset.pattern.permute.xlu0 0
        %553 = vperm.xlu0 %552, %v495
        %v554 = vpop.permute.xlu0 %553
        %557 = vset.pattern.permute.xlu0 0
        %558 = vperm.xlu0 %557, %v496
        %v559 = vpop.permute.xlu0 %558
        %562 = vset.pattern.permute.xlu0 0
        %563 = vperm.xlu0 %562, %v497
        %v564 = vpop.permute.xlu0 %563
        %567 = vset.pattern.permute.xlu0 0
        %568 = vperm.xlu0 %567, %v498
        %v569 = vpop.permute.xlu0 %568
        %572 = vset.pattern.permute.xlu0 0
        %573 = vperm.xlu0 %572, %v499
        %v574 = vpop.permute.xlu0 %573
        %577 = vset.pattern.permute.xlu0 0
        %578 = vperm.xlu0 %577, %v500
        %v579 = vpop.permute.xlu0 %578
        %582 = vset.pattern.permute.xlu0 0
        %583 = vperm.xlu0 %582, %v501
        %v584 = vpop.permute.xlu0 %583
        %587 = vset.pattern.permute.xlu0 0
        %588 = vperm.xlu0 %587, %v502
        %v589 = vpop.permute.xlu0 %588
        %592 = vset.pattern.permute.xlu0 0
        %593 = vperm.xlu0 %592, %v503
        %v594 = vpop.permute.xlu0 %593
        %597 = vset.pattern.permute.xlu0 0
        %598 = vperm.xlu0 %597, %v504
        %v599 = vpop.permute.xlu0 %598
        %602 = vset.pattern.permute.xlu0 0
        %603 = vperm.xlu0 %602, %v505
        %v604 = vpop.permute.xlu0 %603
        %607 = vset.pattern.permute.xlu0 0
        %608 = vperm.xlu0 %607, %v506
        %v609 = vpop.permute.xlu0 %608
        %612 = vset.pattern.permute.xlu0 0
        %613 = vperm.xlu0 %612, %v507
        %v614 = vpop.permute.xlu0 %613
        %617 = vset.pattern.permute.xlu0 0
        %618 = vperm.xlu0 %617, %v508
        %v619 = vpop.permute.xlu0 %618
        %622 = vset.pattern.permute.xlu0 0
        %623 = vperm.xlu0 %622, %v525
        %v624 = vpop.permute.xlu0 %623
        %627 = vset.pattern.permute.xlu0 0
        %628 = vperm.xlu0 %627, %v526
        %v629 = vpop.permute.xlu0 %628
        %632 = vset.pattern.permute.xlu0 0
        %633 = vperm.xlu0 %632, %v527
        %v634 = vpop.permute.xlu0 %633
        %637 = vset.pattern.permute.xlu0 0
        %638 = vperm.xlu0 %637, %v528
        %v639 = vpop.permute.xlu0 %638
        %642 = vset.pattern.permute.xlu0 0
        %643 = vperm.xlu0 %642, %v529
        %v644 = vpop.permute.xlu0 %643
        %647 = vset.pattern.permute.xlu0 0
        %648 = vperm.xlu0 %647, %v530
        %v649 = vpop.permute.xlu0 %648
        %652 = vset.pattern.permute.xlu0 0
        %653 = vperm.xlu0 %652, %v531
        %v654 = vpop.permute.xlu0 %653
        %657 = vset.pattern.permute.xlu0 0
        %658 = vperm.xlu0 %657, %v532
        %v659 = vpop.permute.xlu0 %658
        %662 = vset.pattern.permute.xlu0 0
        %663 = vperm.xlu0 %662, %v533
        %v664 = vpop.permute.xlu0 %663
        %667 = vset.pattern.permute.xlu0 0
        %668 = vperm.xlu0 %667, %v534
        %v669 = vpop.permute.xlu0 %668
        %672 = vset.pattern.permute.xlu0 0
        %673 = vperm.xlu0 %672, %v535
        %v674 = vpop.permute.xlu0 %673
        %677 = vset.pattern.permute.xlu0 0
        %678 = vperm.xlu0 %677, %v536
        %v679 = vpop.permute.xlu0 %678
        %682 = vset.pattern.permute.xlu0 0
        %683 = vperm.xlu0 %682, %v537
        %v684 = vpop.permute.xlu0 %683
        %687 = vset.pattern.permute.xlu0 0
        %688 = vperm.xlu0 %687, %v538
        %v689 = vpop.permute.xlu0 %688
        %692 = vset.pattern.permute.xlu0 0
        %693 = vperm.xlu0 %692, %v539
        %v694 = vpop.permute.xlu0 %693
        %697 = vset.pattern.permute.xlu0 0
        %698 = vperm.xlu0 %697, %v540
        %v699 = vpop.permute.xlu0 %698
        %vm701 = vcmp.gt.f32.partialorder %v544, %v470
        %vm702 = vcmp.gt.f32.partialorder %v544, %v474
        %vm703 = vcmp.gt.f32.partialorder %v549, %v470
        %vm704 = vcmp.gt.f32.partialorder %v549, %v474
        %vm705 = vcmp.gt.f32.partialorder %v554, %v470
        %vm706 = vcmp.gt.f32.partialorder %v554, %v474
        %vm707 = vcmp.gt.f32.partialorder %v559, %v470
        %vm708 = vcmp.gt.f32.partialorder %v559, %v474
        %vm709 = vcmp.gt.f32.partialorder %v564, %v470
        %vm710 = vcmp.gt.f32.partialorder %v564, %v474
        %vm711 = vcmp.gt.f32.partialorder %v569, %v470
        %vm712 = vcmp.gt.f32.partialorder %v569, %v474
        %vm713 = vcmp.gt.f32.partialorder %v574, %v470
        %vm714 = vcmp.gt.f32.partialorder %v574, %v474
        %vm715 = vcmp.gt.f32.partialorder %v579, %v470
        %vm716 = vcmp.gt.f32.partialorder %v579, %v474
        %vm717 = vcmp.gt.f32.partialorder %v584, %v470
        %vm718 = vcmp.gt.f32.partialorder %v584, %v474
        %vm719 = vcmp.gt.f32.partialorder %v589, %v470
        %vm720 = vcmp.gt.f32.partialorder %v589, %v474
        %vm721 = vcmp.gt.f32.partialorder %v594, %v470
        %vm722 = vcmp.gt.f32.partialorder %v594, %v474
        %vm723 = vcmp.gt.f32.partialorder %v599, %v470
        %vm724 = vcmp.gt.f32.partialorder %v599, %v474
        %vm725 = vcmp.gt.f32.partialorder %v604, %v470
        %vm726 = vcmp.gt.f32.partialorder %v604, %v474
        %vm727 = vcmp.gt.f32.partialorder %v609, %v470
        %vm728 = vcmp.gt.f32.partialorder %v609, %v474
        %vm729 = vcmp.gt.f32.partialorder %v614, %v470
        %vm730 = vcmp.gt.f32.partialorder %v614, %v474
        %vm731 = vcmp.gt.f32.partialorder %v619, %v470
        %vm732 = vcmp.gt.f32.partialorder %v619, %v474
        %vm733 = vcmp.gt.f32.partialorder %v624, %v470
        %vm734 = vcmp.gt.f32.partialorder %v624, %v474
        %vm735 = vcmp.gt.f32.partialorder %v629, %v470
        %vm736 = vcmp.gt.f32.partialorder %v629, %v474
        %vm737 = vcmp.gt.f32.partialorder %v634, %v470
        %vm738 = vcmp.gt.f32.partialorder %v634, %v474
        %vm739 = vcmp.gt.f32.partialorder %v639, %v470
        %vm740 = vcmp.gt.f32.partialorder %v639, %v474
        %vm741 = vcmp.gt.f32.partialorder %v644, %v470
        %vm742 = vcmp.gt.f32.partialorder %v644, %v474
        %vm743 = vcmp.gt.f32.partialorder %v649, %v470
        %vm744 = vcmp.gt.f32.partialorder %v649, %v474
        %vm745 = vcmp.gt.f32.partialorder %v654, %v470
        %vm746 = vcmp.gt.f32.partialorder %v654, %v474
        %vm747 = vcmp.gt.f32.partialorder %v659, %v470
        %vm748 = vcmp.gt.f32.partialorder %v659, %v474
        %vm749 = vcmp.gt.f32.partialorder %v664, %v470
        %vm750 = vcmp.gt.f32.partialorder %v664, %v474
        %vm751 = vcmp.gt.f32.partialorder %v669, %v470
        %vm752 = vcmp.gt.f32.partialorder %v669, %v474
        %vm753 = vcmp.gt.f32.partialorder %v674, %v470
        %vm754 = vcmp.gt.f32.partialorder %v674, %v474
        %vm755 = vcmp.gt.f32.partialorder %v679, %v470
        %vm756 = vcmp.gt.f32.partialorder %v679, %v474
        %vm757 = vcmp.gt.f32.partialorder %v684, %v470
        %vm758 = vcmp.gt.f32.partialorder %v684, %v474
        %vm759 = vcmp.gt.f32.partialorder %v689, %v470
        %vm760 = vcmp.gt.f32.partialorder %v689, %v474
        %vm761 = vcmp.gt.f32.partialorder %v694, %v470
        %vm762 = vcmp.gt.f32.partialorder %v694, %v474
        %vm763 = vcmp.gt.f32.partialorder %v699, %v470
        %vm764 = vcmp.gt.f32.partialorder %v699, %v474
        %v765 = vsel %vm701, 1, 0
        %v766 = vsel %vm702, 1, 0
        %v767 = vsel %vm703, 1, 0
        %v768 = vsel %vm704, 1, 0
        %v769 = vsel %vm705, 1, 0
        %v770 = vsel %vm706, 1, 0
        %v771 = vsel %vm707, 1, 0
        %v772 = vsel %vm708, 1, 0
        %v773 = vsel %vm709, 1, 0
        %v774 = vsel %vm710, 1, 0
        %v775 = vsel %vm711, 1, 0
        %v776 = vsel %vm712, 1, 0
        %v777 = vsel %vm713, 1, 0
        %v778 = vsel %vm714, 1, 0
        %v779 = vsel %vm715, 1, 0
        %v780 = vsel %vm716, 1, 0
        %v781 = vsel %vm717, 1, 0
        %v782 = vsel %vm718, 1, 0
        %v783 = vsel %vm719, 1, 0
        %v784 = vsel %vm720, 1, 0
        %v785 = vsel %vm721, 1, 0
        %v786 = vsel %vm722, 1, 0
        %v787 = vsel %vm723, 1, 0
        %v788 = vsel %vm724, 1, 0
        %v789 = vsel %vm725, 1, 0
        %v790 = vsel %vm726, 1, 0
        %v791 = vsel %vm727, 1, 0
        %v792 = vsel %vm728, 1, 0
        %v793 = vsel %vm729, 1, 0
        %v794 = vsel %vm730, 1, 0
        %v795 = vsel %vm731, 1, 0
        %v796 = vsel %vm732, 1, 0
        %v797 = vsel %vm733, 1, 0
        %v798 = vsel %vm734, 1, 0
        %v799 = vsel %vm735, 1, 0
        %v800 = vsel %vm736, 1, 0
        %v801 = vsel %vm737, 1, 0
        %v802 = vsel %vm738, 1, 0
        %v803 = vsel %vm739, 1, 0
        %v804 = vsel %vm740, 1, 0
        %v805 = vsel %vm741, 1, 0
        %v806 = vsel %vm742, 1, 0
        %v807 = vsel %vm743, 1, 0
        %v808 = vsel %vm744, 1, 0
        %v809 = vsel %vm745, 1, 0
        %v810 = vsel %vm746, 1, 0
        %v811 = vsel %vm747, 1, 0
        %v812 = vsel %vm748, 1, 0
        %v813 = vsel %vm749, 1, 0
        %v814 = vsel %vm750, 1, 0
        %v815 = vsel %vm751, 1, 0
        %v816 = vsel %vm752, 1, 0
        %v817 = vsel %vm753, 1, 0
        %v818 = vsel %vm754, 1, 0
        %v819 = vsel %vm755, 1, 0
        %v820 = vsel %vm756, 1, 0
        %v821 = vsel %vm757, 1, 0
        %v822 = vsel %vm758, 1, 0
        %v823 = vsel %vm759, 1, 0
        %v824 = vsel %vm760, 1, 0
        %v825 = vsel %vm761, 1, 0
        %v826 = vsel %vm762, 1, 0
        %v827 = vsel %vm763, 1, 0
        %v828 = vsel %vm764, 1, 0
        %v829 = vcvt.s32.f32 %v765
        %v830 = vcvt.s32.f32 %v766
        %v831 = vcvt.s32.f32 %v767
        %v832 = vcvt.s32.f32 %v768
        %v833 = vcvt.s32.f32 %v769
        %v834 = vcvt.s32.f32 %v770
        %v835 = vcvt.s32.f32 %v771
        %v836 = vcvt.s32.f32 %v772
        %v837 = vcvt.s32.f32 %v773
        %v838 = vcvt.s32.f32 %v774
        %v839 = vcvt.s32.f32 %v775
        %v840 = vcvt.s32.f32 %v776
        %v841 = vcvt.s32.f32 %v777
        %v842 = vcvt.s32.f32 %v778
        %v843 = vcvt.s32.f32 %v779
        %v844 = vcvt.s32.f32 %v780
        %v845 = vcvt.s32.f32 %v781
        %v846 = vcvt.s32.f32 %v782
        %v847 = vcvt.s32.f32 %v783
        %v848 = vcvt.s32.f32 %v784
        %v849 = vcvt.s32.f32 %v785
        %v850 = vcvt.s32.f32 %v786
        %v851 = vcvt.s32.f32 %v787
        %v852 = vcvt.s32.f32 %v788
        %v853 = vcvt.s32.f32 %v789
        %v854 = vcvt.s32.f32 %v790
        %v855 = vcvt.s32.f32 %v791
        %v856 = vcvt.s32.f32 %v792
        %v857 = vcvt.s32.f32 %v793
        %v858 = vcvt.s32.f32 %v794
        %v859 = vcvt.s32.f32 %v795
        %v860 = vcvt.s32.f32 %v796
        %v861 = vcvt.s32.f32 %v797
        %v862 = vcvt.s32.f32 %v798
        %v863 = vcvt.s32.f32 %v799
        %v864 = vcvt.s32.f32 %v800
        %v865 = vcvt.s32.f32 %v801
        %v866 = vcvt.s32.f32 %v802
        %v867 = vcvt.s32.f32 %v803
        %v868 = vcvt.s32.f32 %v804
        %v869 = vcvt.s32.f32 %v805
        %v870 = vcvt.s32.f32 %v806
        %v871 = vcvt.s32.f32 %v807
        %v872 = vcvt.s32.f32 %v808
        %v873 = vcvt.s32.f32 %v809
        %v874 = vcvt.s32.f32 %v810
        %v875 = vcvt.s32.f32 %v811
        %v876 = vcvt.s32.f32 %v812
        %v877 = vcvt.s32.f32 %v813
        %v878 = vcvt.s32.f32 %v814
        %v879 = vcvt.s32.f32 %v815
        %v880 = vcvt.s32.f32 %v816
        %v881 = vcvt.s32.f32 %v817
        %v882 = vcvt.s32.f32 %v818
        %v883 = vcvt.s32.f32 %v819
        %v884 = vcvt.s32.f32 %v820
        %v885 = vcvt.s32.f32 %v821
        %v886 = vcvt.s32.f32 %v822
        %v887 = vcvt.s32.f32 %v823
        %v888 = vcvt.s32.f32 %v824
        %v889 = vcvt.s32.f32 %v825
        %v890 = vcvt.s32.f32 %v826
        %v891 = vcvt.s32.f32 %v827
        %v892 = vcvt.s32.f32 %v828
        %v893 = vpack.c.bf16 %v831, %v829
        %v894 = vpack.c.bf16 %v832, %v830
        %v895 = vpack.c.bf16 %v835, %v833
        %v896 = vpack.c.bf16 %v836, %v834
        %v897 = vpack.c.bf16 %v839, %v837
        %v898 = vpack.c.bf16 %v840, %v838
        %v899 = vpack.c.bf16 %v843, %v841
        %v900 = vpack.c.bf16 %v844, %v842
        %v901 = vpack.c.bf16 %v847, %v845
        %v902 = vpack.c.bf16 %v848, %v846
        %v903 = vpack.c.bf16 %v851, %v849
        %v904 = vpack.c.bf16 %v852, %v850
        %v905 = vpack.c.bf16 %v855, %v853
        %v906 = vpack.c.bf16 %v856, %v854
        %v907 = vpack.c.bf16 %v859, %v857
        %v908 = vpack.c.bf16 %v860, %v858
        %v909 = vpack.c.bf16 %v863, %v861
        %v910 = vpack.c.bf16 %v864, %v862
        %v911 = vpack.c.bf16 %v867, %v865
        %v912 = vpack.c.bf16 %v868, %v866
        %v913 = vpack.c.bf16 %v871, %v869
        %v914 = vpack.c.bf16 %v872, %v870
        %v915 = vpack.c.bf16 %v875, %v873
        %v916 = vpack.c.bf16 %v876, %v874
        %v917 = vpack.c.bf16 %v879, %v877
        %v918 = vpack.c.bf16 %v880, %v878
        %v919 = vpack.c.bf16 %v883, %v881
        %v920 = vpack.c.bf16 %v884, %v882
        %v921 = vpack.c.bf16 %v887, %v885
        %v922 = vpack.c.bf16 %v888, %v886
        %v923 = vpack.c.bf16 %v891, %v889
        %v924 = vpack.c.bf16 %v892, %v890
        %vm925 = vcmp.eq.f32.partialorder %v544, %v470
        %vm926 = vcmp.eq.f32.partialorder %v544, %v474
        %vm927 = vcmp.eq.f32.partialorder %v549, %v470
        %vm928 = vcmp.eq.f32.partialorder %v549, %v474
        %vm929 = vcmp.eq.f32.partialorder %v554, %v470
        %vm930 = vcmp.eq.f32.partialorder %v554, %v474
        %vm931 = vcmp.eq.f32.partialorder %v559, %v470
        %vm932 = vcmp.eq.f32.partialorder %v559, %v474
        %vm933 = vcmp.eq.f32.partialorder %v564, %v470
        %vm934 = vcmp.eq.f32.partialorder %v564, %v474
        %vm935 = vcmp.eq.f32.partialorder %v569, %v470
        %vm936 = vcmp.eq.f32.partialorder %v569, %v474
        %vm937 = vcmp.eq.f32.partialorder %v574, %v470
        %vm938 = vcmp.eq.f32.partialorder %v574, %v474
        %vm939 = vcmp.eq.f32.partialorder %v579, %v470
        %vm940 = vcmp.eq.f32.partialorder %v579, %v474
        %vm941 = vcmp.eq.f32.partialorder %v584, %v470
        %vm942 = vcmp.eq.f32.partialorder %v584, %v474
        %vm943 = vcmp.eq.f32.partialorder %v589, %v470
        %vm944 = vcmp.eq.f32.partialorder %v589, %v474
        %vm945 = vcmp.eq.f32.partialorder %v594, %v470
        %vm946 = vcmp.eq.f32.partialorder %v594, %v474
        %vm947 = vcmp.eq.f32.partialorder %v599, %v470
        %vm948 = vcmp.eq.f32.partialorder %v599, %v474
        %vm949 = vcmp.eq.f32.partialorder %v604, %v470
        %vm950 = vcmp.eq.f32.partialorder %v604, %v474
        %vm951 = vcmp.eq.f32.partialorder %v609, %v470
        %vm952 = vcmp.eq.f32.partialorder %v609, %v474
        %vm953 = vcmp.eq.f32.partialorder %v614, %v470
        %vm954 = vcmp.eq.f32.partialorder %v614, %v474
        %vm955 = vcmp.eq.f32.partialorder %v619, %v470
        %vm956 = vcmp.eq.f32.partialorder %v619, %v474
        %vm957 = vcmp.eq.f32.partialorder %v624, %v470
        %vm958 = vcmp.eq.f32.partialorder %v624, %v474
        %vm959 = vcmp.eq.f32.partialorder %v629, %v470
        %vm960 = vcmp.eq.f32.partialorder %v629, %v474
        %vm961 = vcmp.eq.f32.partialorder %v634, %v470
        %vm962 = vcmp.eq.f32.partialorder %v634, %v474
        %vm963 = vcmp.eq.f32.partialorder %v639, %v470
        %vm964 = vcmp.eq.f32.partialorder %v639, %v474
        %vm965 = vcmp.eq.f32.partialorder %v644, %v470
        %vm966 = vcmp.eq.f32.partialorder %v644, %v474
        %vm967 = vcmp.eq.f32.partialorder %v649, %v470
        %vm968 = vcmp.eq.f32.partialorder %v649, %v474
        %vm969 = vcmp.eq.f32.partialorder %v654, %v470
        %vm970 = vcmp.eq.f32.partialorder %v654, %v474
        %vm971 = vcmp.eq.f32.partialorder %v659, %v470
        %vm972 = vcmp.eq.f32.partialorder %v659, %v474
        %vm973 = vcmp.eq.f32.partialorder %v664, %v470
        %vm974 = vcmp.eq.f32.partialorder %v664, %v474
        %vm975 = vcmp.eq.f32.partialorder %v669, %v470
        %vm976 = vcmp.eq.f32.partialorder %v669, %v474
        %vm977 = vcmp.eq.f32.partialorder %v674, %v470
        %vm978 = vcmp.eq.f32.partialorder %v674, %v474
        %vm979 = vcmp.eq.f32.partialorder %v679, %v470
        %vm980 = vcmp.eq.f32.partialorder %v679, %v474
        %vm981 = vcmp.eq.f32.partialorder %v684, %v470
        %vm982 = vcmp.eq.f32.partialorder %v684, %v474
        %vm983 = vcmp.eq.f32.partialorder %v689, %v470
        %vm984 = vcmp.eq.f32.partialorder %v689, %v474
        %vm985 = vcmp.eq.f32.partialorder %v694, %v470
        %vm986 = vcmp.eq.f32.partialorder %v694, %v474
        %vm987 = vcmp.eq.f32.partialorder %v699, %v470
        %vm988 = vcmp.eq.f32.partialorder %v699, %v474
        %vm989 = vmpackc.low %vm927, %vm925
        %vm990 = vmpackc.low %vm928, %vm926
        %vm991 = vmpackc.low %vm931, %vm929
        %vm992 = vmpackc.low %vm932, %vm930
        %vm993 = vmpackc.low %vm935, %vm933
        %vm994 = vmpackc.low %vm936, %vm934
        %vm995 = vmpackc.low %vm939, %vm937
        %vm996 = vmpackc.low %vm940, %vm938
        %vm997 = vmpackc.low %vm943, %vm941
        %vm998 = vmpackc.low %vm944, %vm942
        %vm999 = vmpackc.low %vm947, %vm945
        %vm1000 = vmpackc.low %vm948, %vm946
        %vm1001 = vmpackc.low %vm951, %vm949
        %vm1002 = vmpackc.low %vm952, %vm950
        %vm1003 = vmpackc.low %vm955, %vm953
        %vm1004 = vmpackc.low %vm956, %vm954
        %vm1005 = vmpackc.low %vm959, %vm957
        %vm1006 = vmpackc.low %vm960, %vm958
        %vm1007 = vmpackc.low %vm963, %vm961
        %vm1008 = vmpackc.low %vm964, %vm962
        %vm1009 = vmpackc.low %vm967, %vm965
        %vm1010 = vmpackc.low %vm968, %vm966
        %vm1011 = vmpackc.low %vm971, %vm969
        %vm1012 = vmpackc.low %vm972, %vm970
        %vm1013 = vmpackc.low %vm975, %vm973
        %vm1014 = vmpackc.low %vm976, %vm974
        %vm1015 = vmpackc.low %vm979, %vm977
        %vm1016 = vmpackc.low %vm980, %vm978
        %vm1017 = vmpackc.low %vm983, %vm981
        %vm1018 = vmpackc.low %vm984, %vm982
        %vm1019 = vmpackc.low %vm987, %vm985
        %vm1020 = vmpackc.low %vm988, %vm986
        %v1021 = vsel %vm989, %v428, %v893
        %v1022 = vsel %vm990, %v429, %v894
        %v1023 = vsel %vm991, %v430, %v895
        %v1024 = vsel %vm992, %v431, %v896
        %v1025 = vsel %vm993, %v432, %v897
        %v1026 = vsel %vm994, %v433, %v898
        %v1027 = vsel %vm995, %v434, %v899
        %v1028 = vsel %vm996, %v435, %v900
        %v1029 = vsel %vm997, %v436, %v901
        %v1030 = vsel %vm998, %v437, %v902
        %v1031 = vsel %vm999, %v438, %v903
        %v1032 = vsel %vm1000, %v439, %v904
        %v1033 = vsel %vm1001, %v440, %v905
        %v1034 = vsel %vm1002, %v441, %v906
        %v1035 = vsel %vm1003, %v442, %v907
        %v1036 = vsel %vm1004, %v443, %v908
        %v1037 = vsel %vm1005, %v444, %v909
        %v1038 = vsel %vm1006, %v445, %v910
        %v1039 = vsel %vm1007, %v446, %v911
        %v1040 = vsel %vm1008, %v447, %v912
        %v1041 = vsel %vm1009, %v448, %v913
        %v1042 = vsel %vm1010, %v449, %v914
        %v1043 = vsel %vm1011, %v450, %v915
        %v1044 = vsel %vm1012, %v451, %v916
        %v1045 = vsel %vm1013, %v452, %v917
        %v1046 = vsel %vm1014, %v453, %v918
        %v1047 = vsel %vm1015, %v454, %v919
        %v1048 = vsel %vm1016, %v455, %v920
        %v1049 = vsel %vm1017, %v456, %v921
        %v1050 = vsel %vm1018, %v457, %v922
        %v1051 = vsel %vm1019, %v458, %v923
        %v1052 = vsel %vm1020, %v459, %v924
        %v1054 = vlaneseq
        %v1055 = vshrl.u32 %v1054, 7
        %v1056 = vsub.s32 0, %v1055
        %v1057 = vrot.slane %v461, %v1056
        %v1058 = vlaneseq
        %v1059 = vshrl.u32 %v1058, 7
        %v1060 = vsub.s32 1, %v1059
        %v1061 = vrot.slane %v461, %v1060
        %vm1064 = vcmask 1040384
        %v1065 = vsel %vm1064, 1.0, %v1057
        %v1066 = vsel %vm1064, 1.0, %v1061
        %vm1067 = vcmask 1041408
        %v1068 = vsel %vm1067, %v1065, 0.0
        %v1069 = vsel %vm1067, %v1066, 0.0
        %v1070 = vpack.c.bf16 %v1068, %v1068
        %v1071 = vpack.c.bf16 %v1069, %v1069
        %v1072 = vld [vmem:[#allocation2] sm:$0xff]
        %v1073 = vld [vmem:[#allocation2 + $0x8] sm:$0xff]
        %1074 = vmatprep.subr.bf16.mxu0 %v1036
        %1075 = vmatpush1.bf16.msra.mxu0 %v1035
        %1076 = vmatprep.subr.bf16.mxu0 %v1034
        %1077 = vmatpush1.bf16.msra.mxu0 %v1033
        %1078 = vmatprep.subr.bf16.mxu0 %v1032
        %1079 = vmatpush1.bf16.msra.mxu0 %v1031
        %1080 = vmatprep.subr.bf16.mxu0 %v1030
        %1081 = vmatpush1.bf16.msra.mxu0 %v1029
        %1082 = vmatprep.subr.bf16.mxu0 %v1028
        %1083 = vmatpush1.bf16.msra.mxu0 %v1027
        %1084 = vmatprep.subr.bf16.mxu0 %v1026
        %1085 = vmatpush1.bf16.msra.mxu0 %v1025
        %1086 = vmatprep.subr.bf16.mxu0 %v1024
        %1087 = vmatpush1.bf16.msra.mxu0 %v1023
        %1088 = vmatprep.subr.bf16.mxu0 %v1022
        %1089 = vmatpush1.bf16.msra.mxu0 %v1021
        %1090 = vmatprep.subr.bf16.mxu0 %v1052
        %1091 = vmatpush2.bf16.msra.mxu0 %v1051
        %1092 = vmatprep.subr.bf16.mxu0 %v1050
        %1093 = vmatpush2.bf16.msra.mxu0 %v1049
        %1094 = vmatprep.subr.bf16.mxu0 %v1048
        %1095 = vmatpush2.bf16.msra.mxu0 %v1047
        %1096 = vmatprep.subr.bf16.mxu0 %v1046
        %1097 = vmatpush2.bf16.msra.mxu0 %v1045
        %1098 = vmatprep.subr.bf16.mxu0 %v1044
        %1099 = vmatpush2.bf16.msra.mxu0 %v1043
        %1100 = vmatprep.subr.bf16.mxu0 %v1042
        %1101 = vmatpush2.bf16.msra.mxu0 %v1041
        %1102 = vmatprep.subr.bf16.mxu0 %v1040
        %1103 = vmatpush2.bf16.msra.mxu0 %v1039
        %1104 = vmatprep.subr.bf16.mxu0 %v1038
        %1105 = vmatpush2.bf16.msra.mxu0 %v1037
        %1106 = vmatprep.mubr.bf16.mxu0 %v1071
        %1107 = vmatmul.mubr.bf16.gmra.mxu0 %v1070
        %v1108 = vpop.f32.mrf.mxu0
        %v1109 = vadd.f32 0.0, %v1108
        %v1110 = vpop.f32.mrf.mxu0
        %v1111 = vadd.f32 0.0, %v1110
        %v1112 = vpop.f32.mrf.mxu0
        %v1113 = vpop.f32.mrf.mxu0
        %1114 = vdwg.mxu0
        %v1115 = vadd.f32 %v1072, %v1109
        %v1116 = vadd.f32 %v1073, %v1111
        %1117 = vst [vmem:[#allocation2] sm:$0xff] %v1115
        %1118 = vst [vmem:[#allocation2 + $0x8] sm:$0xff] %v1116
        %v1119 = vld [vmem:[#allocation2] sm:$0xff]
        %v1120 = vld [vmem:[#allocation2 + $0x8] sm:$0xff]
        %v1121 = vld [vmem:[%s160] sm:$0x3]
        %v1122 = vld [vmem:[%s169] sm:$0x3]
        %v1123 = vmul.f32 %v1122, 2.0
        %v1124 = vsub.f32 %v1123, 1.0
        %v1125 = vmul.f32 %v1121, %v1124
        %v1126 = vsub.f32 1.0, %v1125
        %v1128 = vlaneseq
        %v1129 = vshrl.u32 %v1128, 7
        %v1130 = vsub.s32 0, %v1129
        %v1131 = vrot.slane %v1122, %v1130
        %v1132 = vlaneseq
        %v1133 = vshrl.u32 %v1132, 7
        %v1134 = vsub.s32 1, %v1133
        %v1135 = vrot.slane %v1122, %v1134
        %v1138 = vsel %vm1064, %v1131, 0.0
        %v1139 = vsel %vm1064, %v1135, 0.0
        %v1140 = vadd.f32 %v1138, %v1139
        %1141 = vadd.xlane.f32.xlu0 %v1140
        %v1142 = vpop.xlane.xlu0 %1141
        %v1143 = vrot.slane %v1142, 4
        %v1144 = vadd.f32 %v1142, %v1143
        %v1145 = vrot.slane %v1144, 2
        %v1146 = vadd.f32 %v1144, %v1145
        %v1147 = vrot.slane %v1146, 1
        %v1148 = vadd.f32 %v1146, %v1147
        %s1149 = vtos %v1148
        %v1150 = vstv %s1149
        %v1151 = vsub.f32 %v1150, %v1119
        %v1152 = vsub.f32 %v1150, %v1120
        %v1153 = vadd.f32 %v1150, %v1119
        %v1154 = vadd.f32 %v1150, %v1120
        %v1157 = vrot.slane %v1119, 1
        %v1158 = vrot.slane %v1120, 1
        %v1161 = vsub.f32 %v1153, %v1157
        %v1162 = vsub.f32 %v1154, %v1158
        %v1165 = vrot.slane %v1161, 7
        %v1166 = vrot.slane %v1162, 7
        %v1169 = vrcp.pop %v1165
        %v1170 = vmul.f32 %v1151, %v1169
        %v1171 = vrcp.pop %v1166
        %v1172 = vmul.f32 %v1152, %v1171
        %v1173 = vsub.f32 1.0, %v1170
        %v1174 = vsub.f32 1.0, %v1172
        %v1175 = vsub.f32 %v1119, 1.0
        %v1176 = vsub.f32 %v1120, 1.0
        %v1177 = vadd.f32 %v1150, %v1175
        %v1178 = vadd.f32 %v1150, %v1176
        %v1179 = vsub.f32 %v1119, %v1131
        %v1180 = vsub.f32 %v1120, %v1135
        %v1183 = vrot.slane %v1179, 1
        %v1184 = vrot.slane %v1180, 1
        %v1187 = vsub.f32 %v1177, %v1183
        %v1188 = vsub.f32 %v1178, %v1184
        %v1189 = vmax.f32 %v1187, 1.0
        %v1190 = vmax.f32 %v1188, 1.0
        %v1191 = vsub.f32 %v1150, %v1179
        %v1192 = vsub.f32 %v1150, %v1180
        %v1195 = vrot.slane %v1189, 7
        %v1196 = vrot.slane %v1190, 7
        %v1199 = vrcp.pop %v1195
        %v1200 = vmul.f32 %v1191, %v1199
        %v1201 = vrcp.pop %v1196
        %v1202 = vmul.f32 %v1192, %v1201
        %v1203 = vsub.f32 1.0, %v1200
        %v1204 = vsub.f32 1.0, %v1202
        %vm1205 = vcmp.le.f32.partialorder %v1119, 1.0
        %vm1206 = vcmp.le.f32.partialorder %v1120, 1.0
        %v1207 = vsub.f32 %v1173, %v1203
        %v1208 = vsub.f32 %v1174, %v1204
        %v1211 = vrot.slane %v1173, 1
        %v1212 = vrot.slane %v1174, 1
        %v1217 = vrot.slane %v1207, 1
        %v1218 = vrot.slane %v1208, 1
        %v1221 = vsel %vm1205, %v1211, %v1217
        %v1222 = vsel %vm1206, %v1212, %v1218
        %vm1223 = vcmp.gt.f32.partialorder %v1126, 0.0
        %v1224 = vadd.f32 %v1126, 1.0
        %v1225 = vmul.f32 %v1126, 1.442695
        %v1226 = vpow.pop %v1225
        %v1227 = vsel %vm1223, %v1224, %v1226
        %v1230 = vcombine.low %v1221, %v1222
        %v1232 = vunpack.c.l.s4 1966171168
        %v1233 = vunpack.c.0.s8 %v1232
        %v1234 = vlaneseq
        %v1235 = vshrl.u32 %v1234, 7
        %v1236 = vsub.s32 %v1233, %v1235
        %v1237 = vrot.slane %v1230, %v1236
        %v1239 = vunpack.c.l.s4 1966171168
        %v1240 = vunpack.c.0.s8 %v1239
        %v1241 = vlaneseq
        %v1242 = vshrl.u32 %v1241, 7
        %v1243 = vsub.s32 %v1240, %v1242
        %v1244 = vrot.slane %v1237, %v1243
        %v1246 = vmul.f32 %v1227, %v1244
        %v1248 = vlaneseq
        %v1249 = vshrl.u32 %v1248, 7
        %v1250 = vsub.s32 0, %v1249
        %v1251 = vrot.slane %v1246, %v1250
        %v1252 = vlaneseq
        %v1253 = vshrl.u32 %v1252, 7
        %v1254 = vsub.s32 1, %v1253
        %v1255 = vrot.slane %v1246, %v1254
        %v1258 = vsel %vm1064, %v1251, 0.0
        %v1259 = vsel %vm1064, %v1255, 0.0
        %v1260 = vadd.f32 %v1258, %v1259
        %1261 = vadd.xlane.f32.xlu0 %v1260
        %v1262 = vpop.xlane.xlu0 %1261
        %1263 = vst.msk [vmem:[%s195] sm:$0x1] %vm234, %v1262
        %p1264 = scmp.lt.s32.totalorder %s19, 1
        %s1265 = scalar_select %p1264, %s19, 1
        %s1266 = scalar_lea.vmem %s2, %s1265
        // Predicated region
        $region37: #{tpu_custom_call.1} parent=27 // pred_check
          %p1267 = pneg %p89
        $region38: #{tpu_custom_call.1} parent=27 // pred_check_branch
          %1269 = sbr.rel (%p1267) target = $region40
        $region39: #{tpu_custom_call.1} parent=27 // pred_region
          _
        $region40: #{tpu_custom_call.1} parent=27 // pred_fallthru
          _
      $region28: #{tpu_custom_call.1} parent=5 // pred_fallthru
        _
      %p1270 = scmp.le.s32.totalorder 2, %s14
      // Predicated region
      $region41: #{tpu_custom_call.1} parent=5 // pred_check
        %p1271 = pneg %p1270
      $region42: #{tpu_custom_call.1} parent=5 // pred_check_branch
        %1273 = sbr.rel (%p1271) target = $region44
      $region43: #{tpu_custom_call.1} parent=5 // pred_region
        %s1274 = ssub.s32 %s14, 2
        // Predicated region
        $region45: #{tpu_custom_call.1} parent=43 // pred_check
          %p1275 = pneg %p95
        $region46: #{tpu_custom_call.1} parent=43 // pred_check_branch
          %1277 = sbr.rel (%p1275) target = $region48
        $region47: #{tpu_custom_call.1} parent=43 // pred_region
          %p1278 = scmp.lt.s32.totalorder %s20, 1
          %s1279 = scalar_select %p1278, %s20, 1
          %s1280 = scalar_lea.vmem %s2, %s1279
        $region48: #{tpu_custom_call.1} parent=43 // pred_fallthru
          _
      $region44: #{tpu_custom_call.1} parent=5 // pred_fallthru
        _
    $region6: #{tpu_custom_call.1} parent=1 // loop_footer
      %s18 = sadd.s32 1, %s14
    $region7: #{tpu_custom_call.1} parent=1 // loop_footer_branch
      %13 = sbr.rel target = $region3
    $region8: #{tpu_custom_call.1} parent=1 // loop_exit
      _
    %1281 = vsyncpa [#allocation4], 1
    %s1282 = scalar_lea.sflag [#allocation4], 1
    %1283 = vsyncpa %s1282, 1
    %1284 = vsyncpa [#allocation6], 1
    %s1285 = scalar_lea.sflag [#allocation6], 1
    %1286 = vsyncpa %s1285, 1

</llo_original>
